<compile_context>
chip_gen: v5e
topology: v5e:2x2
jax: 0.10.0
libtpu: 0.0.40
codegen_flags: <defaults>
</compile_context>

<pallas_src>
import functools

import jax
import jax.numpy as jnp
import numpy as np
from jax.experimental import pallas as pl
from jax.experimental.pallas import tpu as pltpu


def _rgcn_kernel(num_bonds, c_out, a_ref, x_ref, w_ref, root_ref, o_ref):
    """Single-invocation fused RGCN forward.

    a_ref   : [N, num_bonds*N]       relation-packed adjacency (lane-concat of A_r)
    x_ref   : [N, C_in]              node features
    w_ref   : [C_in, num_bonds*C_out] relation-packed basis-combined weights
    root_ref: [C_in, C_out]          root (self-loop) weight
    o_ref   : [N, C_out]             output
    """
    x = x_ref[...]

    # All relations' messages in one MXU matmul: [N, 32] @ [32, 128] -> [N, 128]
    msg_all = jnp.dot(x, w_ref[...], preferred_element_type=jnp.float32)

    # Re-stack messages relation-major along rows: [num_bonds*N, C_out] = [256, 32]
    msg_stack = jnp.concatenate(
        [msg_all[:, r * c_out:(r + 1) * c_out] for r in range(num_bonds)],
        axis=0)

    # sum_r A_r @ msg_r as one matmul with K = num_bonds*N = 256:
    # [N, 256] @ [256, 32] -> [N, 32]
    agg = jnp.dot(a_ref[...], msg_stack, preferred_element_type=jnp.float32)

    # Root (self) transform and mean-over-relations epilogue (kept in f32).
    root_out = jnp.dot(x, root_ref[...], preferred_element_type=jnp.float32)
    out = agg * (1.0 / num_bonds) + root_out
    o_ref[...] = out.astype(o_ref.dtype)


def m_rgcn_forward(x, adj, att, basis, root):
    """x: [N, C_in], adj: [num_bonds, N, N] (A[r, dst, src]),
    att: [num_bonds, num_bases], basis: [num_bases, C_in, C_out],
    root: [C_in, C_out] -> [N, C_out]."""
    N, C_in = x.shape
    num_bonds, num_bases = att.shape
    C_out = root.shape[1]

    # Hoisted basis decomposition (done once in XLA, not per relation in-kernel):
    #   w_r = sum_b att[r, b] * basis[b]
    w_all = jnp.matmul(att, basis.reshape(num_bases, C_in * C_out))
    w_all = w_all.reshape(num_bonds, C_in, C_out)

    # Pack relations into the lane dimension of the weight: [C_in, num_bonds*C_out]
    w_lane = jnp.transpose(w_all, (1, 0, 2)).reshape(C_in, num_bonds * C_out)

    # Pack relations into the lane dimension of the adjacency:
    # A_cat[d, r*N + s] = adj[r, d, s]  -> shape [N, num_bonds*N]
    a_cat = jnp.transpose(adj, (1, 0, 2)).reshape(N, num_bonds * N)

    kernel = functools.partial(_rgcn_kernel, num_bonds, C_out)
    vmem = pltpu.MemorySpace.VMEM
    return pl.pallas_call(
        kernel,
        out_shape=jax.ShapeDtypeStruct((N, C_out), x.dtype),
        in_specs=[
            pl.BlockSpec(memory_space=vmem),   # a_cat  [N, num_bonds*N]
            pl.BlockSpec(memory_space=vmem),   # x      [N, C_in]
            pl.BlockSpec(memory_space=vmem),   # w_lane [C_in, num_bonds*C_out]
            pl.BlockSpec(memory_space=vmem),   # root   [C_in, C_out]
        ],
        out_specs=pl.BlockSpec(memory_space=vmem),
    )(a_cat, x, w_lane, root)


def m_rgcn_reference(x, adj, att, basis, root):
    num_bonds, num_bases = att.shape
    C_in, C_out = root.shape
    w = jnp.matmul(att, basis.reshape(num_bases, -1)).reshape(num_bonds, C_in, C_out)
    # per relation: A_r @ (X @ w_r)
    per_rel = jnp.einsum('rns,si,rio->rno', adj, x, w)
    averaged = per_rel.mean(axis=0)
    return averaged + jnp.matmul(x, root)


if __name__ == "__main__":
    # Small, MXU/(8,128)-friendly synthetic shapes.
    N = 64            # number of atoms (nodes)
    C_in = 32         # in_channels
    C_out = 32        # out_channels
    num_bonds = 4     # number of relations (bond types)
    num_bases = 3     # basis-decomposition rank
    after_relu = False

    key = jax.random.PRNGKey(0)
    k_att, k_basis, k_root, k_x = jax.random.split(key, 4)

    # Deterministic parameter init mirroring reset_parameters().
    att = jax.random.normal(k_att, (num_bonds, num_bases), jnp.float32) / np.sqrt(num_bases)
    if after_relu:
        basis = jax.random.normal(k_basis, (num_bases, C_in, C_out), jnp.float32) * (2.0 / C_in)
        root = jax.random.normal(k_root, (C_in, C_out), jnp.float32) * (2.0 / C_in)
    else:
        basis = jax.random.normal(k_basis, (num_bases, C_in, C_out), jnp.float32) / np.sqrt(C_in)
        root = jax.random.normal(k_root, (C_in, C_out), jnp.float32) / np.sqrt(C_in)

    # Node features (x_dict['atom']).
    x = jax.random.normal(k_x, (N, C_in), jnp.float32)

    # Deterministic edge_index_dict, converted (glue) to dense per-relation
    # adjacency A[r, dst, src] so aggregation becomes a matmul in the kernel.
    E = 96
    adj = jnp.zeros((num_bonds, N, N), jnp.float32)
    e = jnp.arange(E)
    for r in range(num_bonds):
        src = (e * 7 + 3 * r) % N
        dst = (e * 13 + 5 * r) % N
        adj = adj.at[r, dst, src].add(1.0)

    out = m_rgcn_forward(x, adj, att, basis, root)
    out = jax.block_until_ready(out)

    ref = m_rgcn_reference(x, adj, att, basis, root)
    np.testing.assert_allclose(np.asarray(out), np.asarray(ref), rtol=1e-4, atol=1e-4)

    print("KERNEL_OK")
</pallas_src>

<mosaic_0001>
module attributes {stable_mosaic.version = 11 : i64} {
  func.func @_rgcn_kernel(%arg0: memref<64x256xf32, #tpu.memory_space<vmem>>, %arg1: memref<64x32xf32, #tpu.memory_space<vmem>>, %arg2: memref<32x128xf32, #tpu.memory_space<vmem>>, %arg3: memref<32x32xf32, #tpu.memory_space<vmem>>, %arg4: memref<64x32xf32, #tpu.memory_space<vmem>>) attributes {dimension_semantics = [], scalar_prefetch = 0 : i64, scratch_operands = 0 : i64, tpu.core_type = #tpu.core_type<tc>} {
    %c0 = arith.constant 0 : index
    %c0_0 = arith.constant 0 : index
    %0 = vector.load %arg1[%c0, %c0_0] : memref<64x32xf32, #tpu.memory_space<vmem>>, vector<64x32xf32>
    %c0_1 = arith.constant 0 : index
    %c0_2 = arith.constant 0 : index
    %1 = vector.load %arg2[%c0_1, %c0_2] : memref<32x128xf32, #tpu.memory_space<vmem>>, vector<32x128xf32>
    %cst = arith.constant dense<0.000000e+00> : vector<64x128xf32>
    %2 = tpu.matmul %0, %1, %cst {dimension_numbers = #tpu.dot_dimension_numbers<[1], [0], [0], [1], [0, 0, 1, 1], [], []>} : vector<64x32xf32>, vector<32x128xf32>, vector<64x128xf32> -> vector<64x128xf32>
    %3 = vector.extract_strided_slice %2 {offsets = [0, 0], sizes = [64, 32], strides = [1, 1]} : vector<64x128xf32> to vector<64x32xf32>
    %4 = vector.extract_strided_slice %2 {offsets = [0, 32], sizes = [64, 32], strides = [1, 1]} : vector<64x128xf32> to vector<64x32xf32>
    %5 = vector.extract_strided_slice %2 {offsets = [0, 64], sizes = [64, 32], strides = [1, 1]} : vector<64x128xf32> to vector<64x32xf32>
    %6 = vector.extract_strided_slice %2 {offsets = [0, 96], sizes = [64, 32], strides = [1, 1]} : vector<64x128xf32> to vector<64x32xf32>
    %7 = tpu.concatenate %3, %4, %5, %6 in 0 : vector<64x32xf32>, vector<64x32xf32>, vector<64x32xf32>, vector<64x32xf32> -> vector<256x32xf32>
    %c0_3 = arith.constant 0 : index
    %c0_4 = arith.constant 0 : index
    %8 = vector.load %arg0[%c0_3, %c0_4] : memref<64x256xf32, #tpu.memory_space<vmem>>, vector<64x256xf32>
    %cst_5 = arith.constant dense<0.000000e+00> : vector<64x32xf32>
    %9 = tpu.matmul %8, %7, %cst_5 {dimension_numbers = #tpu.dot_dimension_numbers<[1], [0], [0], [1], [0, 0, 1, 1], [], []>} : vector<64x256xf32>, vector<256x32xf32>, vector<64x32xf32> -> vector<64x32xf32>
    %c0_6 = arith.constant 0 : index
    %c0_7 = arith.constant 0 : index
    %10 = vector.load %arg3[%c0_6, %c0_7] : memref<32x32xf32, #tpu.memory_space<vmem>>, vector<32x32xf32>
    %cst_8 = arith.constant dense<0.000000e+00> : vector<64x32xf32>
    %11 = tpu.matmul %0, %10, %cst_8 {dimension_numbers = #tpu.dot_dimension_numbers<[1], [0], [0], [1], [0, 0, 1, 1], [], []>} : vector<64x32xf32>, vector<32x32xf32>, vector<64x32xf32> -> vector<64x32xf32>
    %cst_9 = arith.constant 2.500000e-01 : f32
    %12 = vector.broadcast %cst_9 : f32 to vector<64x32xf32>
    %13 = arith.mulf %9, %12 : vector<64x32xf32>
    %14 = arith.addf %13, %11 : vector<64x32xf32>
    %c0_10 = arith.constant 0 : index
    %c0_11 = arith.constant 0 : index
    %15 = vector.load %arg4[%c0_10, %c0_11] : memref<64x32xf32, #tpu.memory_space<vmem>>, vector<64x32xf32>
    tpu.vector_store %arg4[%c0_10, %c0_11], %14 {strides = array<i32>} : memref<64x32xf32, #tpu.memory_space<vmem>>, vector<64x32xf32>,
    return
  }
}

</mosaic_0001>

<llo_original>
// kernel: tpu_custom_call.1
$region0: #{tpu_custom_call.1}
  #allocation0 [shape = 'u32[]', space=smem, size = 0x4, offset = 0x4, fixed_abs, tag = 'smem constant byte address 0x4 - core index']
  #allocation1 [shape = 'u32[72,128]{1,0:T(1,128)}', space=vmem, size = 0x9000, scoped, tag = 'internal scratch']
  %s0 = inlined_call_operand.hbm [shape: f32[64,256], index: 0, kind: input, shape index: {}]
  %s1 = inlined_call_operand.vmem [shape: f32[64,32], index: 1, kind: input, shape index: {}]
  %s2 = inlined_call_operand.vmem [shape: f32[32,128], index: 2, kind: input, shape index: {}]
  %s3 = inlined_call_operand.vmem [shape: f32[32,32], index: 3, kind: input, shape index: {}]
  %s4 = inlined_call_operand.vmem [shape: f32[64,32], index: 4, kind: output, shape index: {}]
  %s5 = sld [smem:[#allocation0]]
  $region30: #{tpu_custom_call.1} parent=0
    _
  %s7 = ssub.s32 1, %s5
  %s8 = scalar_select 0, %s7, %s5
  $region1: #{tpu_custom_call.1} parent=0
    #allocation2 [shape = 'u8[65536]{0}', space=vmem, size = 0x10000, scoped, tag = 'input window, operand 0, single buffered']
    #allocation3 [shape = 's32[1]{0}', space=sflag, size = 0x4, scoped, tag = 'scoped memory for tpu_custom_call.1']
    %9 = vsyncpa [#allocation3], 0
    // Predicated region
    $region2: #{tpu_custom_call.1} parent=1 // pred_check
      _
    $region3: #{tpu_custom_call.1} parent=1 // pred_check_branch
      %11 = sbr.rel (0) target = $region5
    $region4: #{tpu_custom_call.1} parent=1 // pred_region
      %13 = vsyncadd [#allocation3], 0
      %s14 = sshll.u32 %s0, 4
      %s15 = int_to_ptr.hbm [resolvable:$true] %s14
      %s16 = sshll.u32 [#allocation2], 4
      %s17 = int_to_ptr.vmem [resolvable:$true] %s16
      %22 = dma.hbm_to_vmem [thread:$0]  %s15, 2048, %s17, [#allocation3], 256, 256, 16
    $region5: #{tpu_custom_call.1} parent=1 // pred_fallthru
      _
    // Predicated region
    $region6: #{tpu_custom_call.1} parent=1 // pred_check
      _
    $region7: #{tpu_custom_call.1} parent=1 // pred_check_branch
      %24 = sbr.rel (0) target = $region9
    $region8: #{tpu_custom_call.1} parent=1 // pred_region
      _
    $region9: #{tpu_custom_call.1} parent=1 // pred_fallthru
      _
    // Predicated region
    $region10: #{tpu_custom_call.1} parent=1 // pred_check
      _
    $region11: #{tpu_custom_call.1} parent=1 // pred_check_branch
      %26 = sbr.rel (0) target = $region13
    $region12: #{tpu_custom_call.1} parent=1 // pred_region
      _
    $region13: #{tpu_custom_call.1} parent=1 // pred_fallthru
      _
    // Predicated region
    $region14: #{tpu_custom_call.1} parent=1 // pred_check
      _
    $region15: #{tpu_custom_call.1} parent=1 // pred_check_branch
      %28 = sbr.rel (0) target = $region17
    $region16: #{tpu_custom_call.1} parent=1 // pred_region
      _
    $region17: #{tpu_custom_call.1} parent=1 // pred_fallthru
      _
    // Predicated region
    $region18: #{tpu_custom_call.1} parent=1 // pred_check
      _
    $region19: #{tpu_custom_call.1} parent=1 // pred_check_branch
      %30 = sbr.rel (0) target = $region21
    $region20: #{tpu_custom_call.1} parent=1 // pred_region
      %32 = dma.done [#allocation3], 2048
    $region21: #{tpu_custom_call.1} parent=1 // pred_fallthru
      _
    %v33 = vld [vmem:[%s1] sm:$0xff]
    %v34 = vld [vmem:[%s1 + $0x8] sm:$0xff]
    %v35 = vld [vmem:[%s1 + $0x10] sm:$0xff]
    %v36 = vld [vmem:[%s1 + $0x18] sm:$0xff]
    %v37 = vld [vmem:[%s1 + $0x20] sm:$0xff]
    %v38 = vld [vmem:[%s1 + $0x28] sm:$0xff]
    %v39 = vld [vmem:[%s1 + $0x30] sm:$0xff]
    %v40 = vld [vmem:[%s1 + $0x38] sm:$0xff]
    %v41 = vld [vmem:[%s2] sm:$0xff]
    %v42 = vld [vmem:[%s2 + $0x8] sm:$0xff]
    %v43 = vld [vmem:[%s2 + $0x10] sm:$0xff]
    %v44 = vld [vmem:[%s2 + $0x18] sm:$0xff]
    %vm45 = vcmask 261120
    %v47 = vsel %vm45, %v33, 0
    %v50 = vsel %vm45, %v34, 0
    %v53 = vsel %vm45, %v35, 0
    %v56 = vsel %vm45, %v36, 0
    %v59 = vsel %vm45, %v37, 0
    %v62 = vsel %vm45, %v38, 0
    %v65 = vsel %vm45, %v39, 0
    %v68 = vsel %vm45, %v40, 0
    %70 = vmatpush.msra.mxu0 0.0
    %71 = vmatpush.msra.mxu0 0.0
    %72 = vmatpush.msra.mxu0 0.0
    %73 = vmatpush.msra.mxu0 0.0
    %74 = vmatpush.msra.mxu0 0.0
    %75 = vmatpush.msra.mxu0 0.0
    %76 = vmatpush.msra.mxu0 0.0
    %77 = vmatpush.msra.mxu0 0.0
    %78 = vmatpush.msra.mxu0 0.0
    %79 = vmatpush.msra.mxu0 0.0
    %80 = vmatpush.msra.mxu0 0.0
    %81 = vmatpush.msra.mxu0 0.0
    %82 = vmatpush.msra.mxu0 %v44
    %83 = vmatpush.msra.mxu0 %v43
    %84 = vmatpush.msra.mxu0 %v42
    %85 = vmatpush.msra.mxu0 %v41
    %86 = vmatmul.f32.gmra.mxu0 %v47
    %v87 = vpop.f32.mrf.mxu0
    %v88 = vadd.f32 0.0, %v87
    %89 = vmatmul.f32.gmra.mxu0 %v50
    %v90 = vpop.f32.mrf.mxu0
    %v91 = vadd.f32 0.0, %v90
    %92 = vmatmul.f32.gmra.mxu0 %v53
    %v93 = vpop.f32.mrf.mxu0
    %v94 = vadd.f32 0.0, %v93
    %95 = vmatmul.f32.gmra.mxu0 %v56
    %v96 = vpop.f32.mrf.mxu0
    %v97 = vadd.f32 0.0, %v96
    %98 = vmatmul.f32.gmra.mxu0 %v59
    %v99 = vpop.f32.mrf.mxu0
    %v100 = vadd.f32 0.0, %v99
    %101 = vmatmul.f32.gmra.mxu0 %v62
    %v102 = vpop.f32.mrf.mxu0
    %v103 = vadd.f32 0.0, %v102
    %104 = vmatmul.f32.gmra.mxu0 %v65
    %v105 = vpop.f32.mrf.mxu0
    %v106 = vadd.f32 0.0, %v105
    %107 = vmatmul.f32.gmra.mxu0 %v68
    %v108 = vpop.f32.mrf.mxu0
    %v109 = vadd.f32 0.0, %v108
    %110 = vdwg.mxu0
    %119 = vrot.lane.b32.xlu0 %v88, 96
    %v120 = vpop.permute.xlu0 %119
    %121 = vrot.lane.b32.xlu0 %v91, 96
    %v122 = vpop.permute.xlu0 %121
    %123 = vrot.lane.b32.xlu0 %v94, 96
    %v124 = vpop.permute.xlu0 %123
    %125 = vrot.lane.b32.xlu0 %v97, 96
    %v126 = vpop.permute.xlu0 %125
    %127 = vrot.lane.b32.xlu0 %v100, 96
    %v128 = vpop.permute.xlu0 %127
    %129 = vrot.lane.b32.xlu0 %v103, 96
    %v130 = vpop.permute.xlu0 %129
    %131 = vrot.lane.b32.xlu0 %v106, 96
    %v132 = vpop.permute.xlu0 %131
    %133 = vrot.lane.b32.xlu0 %v109, 96
    %v134 = vpop.permute.xlu0 %133
    %143 = vrot.lane.b32.xlu0 %v88, 64
    %v144 = vpop.permute.xlu0 %143
    %145 = vrot.lane.b32.xlu0 %v91, 64
    %v146 = vpop.permute.xlu0 %145
    %147 = vrot.lane.b32.xlu0 %v94, 64
    %v148 = vpop.permute.xlu0 %147
    %149 = vrot.lane.b32.xlu0 %v97, 64
    %v150 = vpop.permute.xlu0 %149
    %151 = vrot.lane.b32.xlu0 %v100, 64
    %v152 = vpop.permute.xlu0 %151
    %153 = vrot.lane.b32.xlu0 %v103, 64
    %v154 = vpop.permute.xlu0 %153
    %155 = vrot.lane.b32.xlu0 %v106, 64
    %v156 = vpop.permute.xlu0 %155
    %157 = vrot.lane.b32.xlu0 %v109, 64
    %v158 = vpop.permute.xlu0 %157
    %167 = vrot.lane.b32.xlu0 %v88, 32
    %v168 = vpop.permute.xlu0 %167
    %169 = vrot.lane.b32.xlu0 %v91, 32
    %v170 = vpop.permute.xlu0 %169
    %171 = vrot.lane.b32.xlu0 %v94, 32
    %v172 = vpop.permute.xlu0 %171
    %173 = vrot.lane.b32.xlu0 %v97, 32
    %v174 = vpop.permute.xlu0 %173
    %175 = vrot.lane.b32.xlu0 %v100, 32
    %v176 = vpop.permute.xlu0 %175
    %177 = vrot.lane.b32.xlu0 %v103, 32
    %v178 = vpop.permute.xlu0 %177
    %179 = vrot.lane.b32.xlu0 %v106, 32
    %v180 = vpop.permute.xlu0 %179
    %181 = vrot.lane.b32.xlu0 %v109, 32
    %v182 = vpop.permute.xlu0 %181
    %v191 = vld [vmem:[#allocation2] sm:$0xff]
    %v192 = vld [vmem:[#allocation2 + $0x8] sm:$0xff]
    %v193 = vld [vmem:[#allocation2 + $0x10] sm:$0xff]
    %v194 = vld [vmem:[#allocation2 + $0x18] sm:$0xff]
    %v195 = vld [vmem:[#allocation2 + $0x20] sm:$0xff]
    %v196 = vld [vmem:[#allocation2 + $0x28] sm:$0xff]
    %v197 = vld [vmem:[#allocation2 + $0x30] sm:$0xff]
    %v198 = vld [vmem:[#allocation2 + $0x38] sm:$0xff]
    %v199 = vld [vmem:[#allocation2 + $0x40] sm:$0xff]
    %v200 = vld [vmem:[#allocation2 + $0x48] sm:$0xff]
    %v201 = vld [vmem:[#allocation2 + $0x50] sm:$0xff]
    %v202 = vld [vmem:[#allocation2 + $0x58] sm:$0xff]
    %v203 = vld [vmem:[#allocation2 + $0x60] sm:$0xff]
    %v204 = vld [vmem:[#allocation2 + $0x68] sm:$0xff]
    %v205 = vld [vmem:[#allocation2 + $0x70] sm:$0xff]
    %v206 = vld [vmem:[#allocation2 + $0x78] sm:$0xff]
    %207 = vmatpush.msra.mxu0 %v134
    %208 = vmatpush.msra.mxu0 %v132
    %209 = vmatpush.msra.mxu0 %v130
    %210 = vmatpush.msra.mxu0 %v128
    %211 = vmatpush.msra.mxu0 %v126
    %212 = vmatpush.msra.mxu0 %v124
    %213 = vmatpush.msra.mxu0 %v122
    %214 = vmatpush.msra.mxu0 %v120
    %215 = vmatpush.msra.mxu0 %v109
    %216 = vmatpush.msra.mxu0 %v106
    %217 = vmatpush.msra.mxu0 %v103
    %218 = vmatpush.msra.mxu0 %v100
    %219 = vmatpush.msra.mxu0 %v97
    %220 = vmatpush.msra.mxu0 %v94
    %221 = vmatpush.msra.mxu0 %v91
    %222 = vmatpush.msra.mxu0 %v88
    %223 = vmatmul.f32.gmra.mxu0 %v191
    %v224 = vpop.f32.mrf.mxu0
    %v225 = vadd.f32 0.0, %v224
    %226 = vmatmul.f32.gmra.mxu0 %v193
    %v227 = vpop.f32.mrf.mxu0
    %v228 = vadd.f32 0.0, %v227
    %229 = vmatmul.f32.gmra.mxu0 %v195
    %v230 = vpop.f32.mrf.mxu0
    %v231 = vadd.f32 0.0, %v230
    %232 = vmatmul.f32.gmra.mxu0 %v197
    %v233 = vpop.f32.mrf.mxu0
    %v234 = vadd.f32 0.0, %v233
    %235 = vmatmul.f32.gmra.mxu0 %v199
    %v236 = vpop.f32.mrf.mxu0
    %v237 = vadd.f32 0.0, %v236
    %238 = vmatmul.f32.gmra.mxu0 %v201
    %v239 = vpop.f32.mrf.mxu0
    %v240 = vadd.f32 0.0, %v239
    %241 = vmatmul.f32.gmra.mxu0 %v203
    %v242 = vpop.f32.mrf.mxu0
    %v243 = vadd.f32 0.0, %v242
    %244 = vmatmul.f32.gmra.mxu0 %v205
    %v245 = vpop.f32.mrf.mxu0
    %v246 = vadd.f32 0.0, %v245
    %247 = vdwg.mxu0
    %248 = vmatpush.msra.mxu0 %v182
    %249 = vmatpush.msra.mxu0 %v180
    %250 = vmatpush.msra.mxu0 %v178
    %251 = vmatpush.msra.mxu0 %v176
    %252 = vmatpush.msra.mxu0 %v174
    %253 = vmatpush.msra.mxu0 %v172
    %254 = vmatpush.msra.mxu0 %v170
    %255 = vmatpush.msra.mxu0 %v168
    %256 = vmatpush.msra.mxu0 %v158
    %257 = vmatpush.msra.mxu0 %v156
    %258 = vmatpush.msra.mxu0 %v154
    %259 = vmatpush.msra.mxu0 %v152
    %260 = vmatpush.msra.mxu0 %v150
    %261 = vmatpush.msra.mxu0 %v148
    %262 = vmatpush.msra.mxu0 %v146
    %263 = vmatpush.msra.mxu0 %v144
    %264 = vmatmul.f32.gmra.mxu0 %v192
    %v265 = vpop.f32.mrf.mxu0
    %v266 = vadd.f32 %v225, %v265
    %267 = vmatmul.f32.gmra.mxu0 %v194
    %v268 = vpop.f32.mrf.mxu0
    %v269 = vadd.f32 %v228, %v268
    %270 = vmatmul.f32.gmra.mxu0 %v196
    %v271 = vpop.f32.mrf.mxu0
    %v272 = vadd.f32 %v231, %v271
    %273 = vmatmul.f32.gmra.mxu0 %v198
    %v274 = vpop.f32.mrf.mxu0
    %v275 = vadd.f32 %v234, %v274
    %276 = vmatmul.f32.gmra.mxu0 %v200
    %v277 = vpop.f32.mrf.mxu0
    %v278 = vadd.f32 %v237, %v277
    %279 = vmatmul.f32.gmra.mxu0 %v202
    %v280 = vpop.f32.mrf.mxu0
    %v281 = vadd.f32 %v240, %v280
    %282 = vmatmul.f32.gmra.mxu0 %v204
    %v283 = vpop.f32.mrf.mxu0
    %v284 = vadd.f32 %v243, %v283
    %285 = vmatmul.f32.gmra.mxu0 %v206
    %v286 = vpop.f32.mrf.mxu0
    %v287 = vadd.f32 %v246, %v286
    %288 = vdwg.mxu0
    %v289 = vld [vmem:[%s3] sm:$0xff]
    %v290 = vld [vmem:[%s3 + $0x8] sm:$0xff]
    %v291 = vld [vmem:[%s3 + $0x10] sm:$0xff]
    %v292 = vld [vmem:[%s3 + $0x18] sm:$0xff]
    %293 = vmatpush.msra.mxu0 0.0
    %294 = vmatpush.msra.mxu0 0.0
    %295 = vmatpush.msra.mxu0 0.0
    %296 = vmatpush.msra.mxu0 0.0
    %297 = vmatpush.msra.mxu0 0.0
    %298 = vmatpush.msra.mxu0 0.0
    %299 = vmatpush.msra.mxu0 0.0
    %300 = vmatpush.msra.mxu0 0.0
    %301 = vmatpush.msra.mxu0 0.0
    %302 = vmatpush.msra.mxu0 0.0
    %303 = vmatpush.msra.mxu0 0.0
    %304 = vmatpush.msra.mxu0 0.0
    %305 = vmatpush.msra.mxu0 %v292
    %306 = vmatpush.msra.mxu0 %v291
    %307 = vmatpush.msra.mxu0 %v290
    %308 = vmatpush.msra.mxu0 %v289
    %309 = vmatmul.f32.gmra.mxu0 %v47
    %v310 = vpop.f32.mrf.mxu0
    %v311 = vadd.f32 0.0, %v310
    %312 = vmatmul.f32.gmra.mxu0 %v50
    %v313 = vpop.f32.mrf.mxu0
    %v314 = vadd.f32 0.0, %v313
    %315 = vmatmul.f32.gmra.mxu0 %v53
    %v316 = vpop.f32.mrf.mxu0
    %v317 = vadd.f32 0.0, %v316
    %318 = vmatmul.f32.gmra.mxu0 %v56
    %v319 = vpop.f32.mrf.mxu0
    %v320 = vadd.f32 0.0, %v319
    %321 = vmatmul.f32.gmra.mxu0 %v59
    %v322 = vpop.f32.mrf.mxu0
    %v323 = vadd.f32 0.0, %v322
    %324 = vmatmul.f32.gmra.mxu0 %v62
    %v325 = vpop.f32.mrf.mxu0
    %v326 = vadd.f32 0.0, %v325
    %327 = vmatmul.f32.gmra.mxu0 %v65
    %v328 = vpop.f32.mrf.mxu0
    %v329 = vadd.f32 0.0, %v328
    %330 = vmatmul.f32.gmra.mxu0 %v68
    %v331 = vpop.f32.mrf.mxu0
    %v332 = vadd.f32 0.0, %v331
    %333 = vdwg.mxu0
    %v334 = vmul.f32 %v266, 0.25
    %v335 = vmul.f32 %v269, 0.25
    %v336 = vmul.f32 %v272, 0.25
    %v337 = vmul.f32 %v275, 0.25
    %v338 = vmul.f32 %v278, 0.25
    %v339 = vmul.f32 %v281, 0.25
    %v340 = vmul.f32 %v284, 0.25
    %v341 = vmul.f32 %v287, 0.25
    %v342 = vadd.f32 %v334, %v311
    %v343 = vadd.f32 %v335, %v314
    %v344 = vadd.f32 %v336, %v317
    %v345 = vadd.f32 %v337, %v320
    %v346 = vadd.f32 %v338, %v323
    %v347 = vadd.f32 %v339, %v326
    %v348 = vadd.f32 %v340, %v329
    %v349 = vadd.f32 %v341, %v332
    %350 = vst.msk [vmem:[%s4] sm:$0xff] %vm45, %v342
    %351 = vst.msk [vmem:[%s4 + $0x8] sm:$0xff] %vm45, %v343
    %352 = vst.msk [vmem:[%s4 + $0x10] sm:$0xff] %vm45, %v344
    %353 = vst.msk [vmem:[%s4 + $0x18] sm:$0xff] %vm45, %v345
    %354 = vst.msk [vmem:[%s4 + $0x20] sm:$0xff] %vm45, %v346
    %355 = vst.msk [vmem:[%s4 + $0x28] sm:$0xff] %vm45, %v347
    %356 = vst.msk [vmem:[%s4 + $0x30] sm:$0xff] %vm45, %v348
    %357 = vst.msk [vmem:[%s4 + $0x38] sm:$0xff] %vm45, %v349
    // Predicated region
    $region22: #{tpu_custom_call.1} parent=1 // pred_check
      _
    $region23: #{tpu_custom_call.1} parent=1 // pred_check_branch
      %359 = sbr.rel (0) target = $region25
    $region24: #{tpu_custom_call.1} parent=1 // pred_region
      _
    $region25: #{tpu_custom_call.1} parent=1 // pred_fallthru
      _
    // Predicated region
    $region26: #{tpu_custom_call.1} parent=1 // pred_check
      _
    $region27: #{tpu_custom_call.1} parent=1 // pred_check_branch
      %361 = sbr.rel (0) target = $region29
    $region28: #{tpu_custom_call.1} parent=1 // pred_region
      _
    $region29: #{tpu_custom_call.1} parent=1 // pred_fallthru
      _
    %362 = vsyncpa [#allocation3], 1

</llo_original>
